<compile_context>
chip_gen: v7x
topology: tpu7x:2x2x1
jax: 0.10.0
libtpu: 0.0.40
codegen_flags: <defaults>
</compile_context>

<pallas_src>
import functools

import jax
import jax.numpy as jnp
from jax import lax
from jax.experimental import pallas as pl
from jax.experimental.pallas import tpu as pltpu

BN_EPS = 1e-5


# ---------------------------------------------------------------------------
# In-kernel Mish: mish(y) = y*tanh(softplus(y)) = y*u/(u+2), u = e^y (e^y+2).
# One EUP exp + one approximate reciprocal (+ optional Newton step for f32).
# ---------------------------------------------------------------------------
def _mish(y, *, precise):
    t = jnp.exp(jnp.minimum(y, 20.0))     # clamp: factor saturates to 1 in f32
    u = t * (t + 2.0)
    d = u + 2.0
    r = pl.reciprocal(d, approx=True)
    if precise:                            # skip for bf16 output (review item)
        r = r * (2.0 - d * r)
    return y * (u * r)


# ---------------------------------------------------------------------------
# Fused CrossConv kernel.  One (image, H-row-tile) per grid step.
#   xt_ref : [1,1,Cin_p, th*Wp+pad]  tile's own rows, W-padded, merged spatial
#   xh_ref : [1,1,Cin_p, 2*pad*Wp]   halo rows (pad above ++ pad below the tile)
#   w1_ref : [Cmid_p, k*Cin_p]       cv1 weights, k taps stacked on K (BN folded)
#   sh1_ref: [Cmid_p, 1]             cv1 folded (bias+BN) shift
#   w2_ref : [Cout, k*Cmid_p]
#   sh2_ref: [Cout, 1]
#   o_ref  : [1,1,Cout, th*Wp]       dense stride-1 result for this tile
#   y1p_ref: [Cmid_p, (th+2*pad)*Wp] VMEM scratch: H-halo'd y1 for this tile
# ---------------------------------------------------------------------------
def _cross_conv_kernel(xt_ref, xh_ref, w1_ref, sh1_ref, w2_ref, sh2_ref,
                       o_ref, y1p_ref, *, k, pad, Wp, th, add, precise):
    i = pl.program_id(1)
    nt = pl.num_programs(1)
    Lm = th * Wp                    # merged length of this tile's output rows
    L1m = Lm - (k - 1)              # cv1 positions computed for the main rows
    L1h = 2 * pad * Wp - (k - 1)    # cv1 positions computed for the halo rows
    Cmid_p = y1p_ref.shape[0]
    Cout = o_ref.shape[2]

    w1s = w1_ref[...]               # [Cmid_p, k*Cin_p]
    w2s = w2_ref[...]               # [Cout,  k*Cmid_p]

    # ---- cv1 over the tile's own rows: ONE stacked-K MXU matmul -----------
    xs = jnp.concatenate(
        [xt_ref[0, 0, :, dx:dx + L1m] for dx in range(k)], axis=0)
    y1 = _mish(jnp.dot(w1s, xs, preferred_element_type=jnp.float32)
               + sh1_ref[...], precise=precise)
    y1p_ref[:, pad * Wp: pad * Wp + L1m] = y1.astype(y1p_ref.dtype)
    # (the (k-1)-element tail of the main region is left untouched: it only
    #  ever feeds garbage columns >= W that the wrapper crops)

    # ---- cv1 over the 2*pad halo rows (top ++ bottom), one small matmul ----
    xs_h = jnp.concatenate(
        [xh_ref[0, 0, :, dx:dx + L1h] for dx in range(k)], axis=0)
    y1h = _mish(jnp.dot(w1s, xs_h, preferred_element_type=jnp.float32)
                + sh1_ref[...], precise=precise).astype(y1p_ref.dtype)
    y1p_ref[:, 0: pad * Wp] = y1h[:, 0: pad * Wp]
    y1p_ref[:, (pad + th) * Wp: (pad + th) * Wp + pad * Wp - (k - 1)] = \
        y1h[:, pad * Wp: L1h]

    # ---- image-boundary tiles: conv2's zero padding rows (halo-only zeroing,
    #      keyed on the H-tile index -> correct under megacore grid sharding) --
    @pl.when(i == 0)
    def _():
        y1p_ref[:, 0: pad * Wp] = jnp.zeros((Cmid_p, pad * Wp), y1p_ref.dtype)

    @pl.when(i == nt - 1)
    def _():
        y1p_ref[:, (pad + th) * Wp:] = jnp.zeros((Cmid_p, pad * Wp),
                                                 y1p_ref.dtype)

    # ---- cv2: ONE stacked-K matmul over the k row-shifted scratch views ----
    ys = jnp.concatenate(
        [y1p_ref[:, dy * Wp: dy * Wp + Lm] for dy in range(k)], axis=0)
    y2 = _mish(jnp.dot(w2s, ys, preferred_element_type=jnp.float32)
               + sh2_ref[...], precise=precise)

    if add:  # fused residual; out-of-row columns only pick up cropped junk
        y2 = y2 + xt_ref[0, 0, 0:Cout, pad: pad + Lm].astype(jnp.float32)

    o_ref[0, 0] = y2.astype(o_ref.dtype)


def _largest_divisor_leq(n, cap):
    cap = max(1, min(int(cap), n))
    for d in range(cap, 0, -1):
        if n % d == 0:
            return d
    return 1


# ---------------------------------------------------------------------------
# CrossConv forward (public API matches PyTorch NCHW).
# ---------------------------------------------------------------------------
def cross_conv(x, params, *, kernel_size=3, stride=1, shortcut=False,
               compute_dtype=jnp.float32, out_dtype=None, tile_rows=None,
               vmem_budget_bytes=8 << 20):
    """x: [N, Cin, H, W].  params: (w1,b1,g1,be1,m1,v1, w2,b2,g2,be2,m2,v2)."""
    k = int(kernel_size)
    if k < 3 or k % 2 == 0:
        # TODO(synk): PyTorch autopad for even k is not reproduced here.
        raise NotImplementedError("kernel_size must be odd and >= 3")
    pad = k // 2
    N, Cin, H, W = x.shape
    (w1, b1, g1, be1, m1, v1, w2, b2, g2, be2, m2, v2) = params
    Cmid = w1.shape[0]
    Cout = w2.shape[0]
    add = bool(shortcut) and (Cin == Cout)
    if add and stride != 1:
        raise ValueError("shortcut add requires stride == 1")
    compute_dtype = jnp.dtype(compute_dtype)
    out_dtype = jnp.dtype(out_dtype) if out_dtype is not None else compute_dtype

    Wp = W + 2 * pad

    # Channel padding to the sublane tile keeps in-kernel concats aligned.
    cunit = 16 if compute_dtype.itemsize == 2 else 8
    Cin_p = -(-Cin // cunit) * cunit
    Cmid_p = -(-Cmid // cunit) * cunit

    # ---- H-row tile chooser: bound the per-step VMEM working set ----------
    csz = compute_dtype.itemsize
    per_row = Wp * (Cin_p * csz * (k + 1)                 # x block + stacked cv1 op
                    + Cmid_p * (csz * (k + 1) + 4)        # y1 scratch + stacked cv2 + acc1
                    + Cout * (4 + out_dtype.itemsize))    # acc2 + out block
    cap = max(1, int(vmem_budget_bytes // max(per_row, 1)))
    if tile_rows is not None:
        cap = min(cap, int(tile_rows))
    th = _largest_divisor_leq(H, cap)
    nt = H // th

    Lm = th * Wp                    # merged per-tile output length
    Lblk = Lm + pad                 # + pad tail so the fused residual slice fits
    Lh = 2 * pad * Wp               # merged halo length
    Lp = (th + 2 * pad) * Wp        # H-halo'd y1 scratch length

    # ---- fold conv bias + BatchNorm; stack the k taps onto the K axis -----
    s1 = g1 * lax.rsqrt(v1 + BN_EPS)
    s2 = g2 * lax.rsqrt(v2 + BN_EPS)
    sh1 = jnp.pad((be1 + (b1 - m1) * s1).astype(jnp.float32),
                  (0, Cmid_p - Cmid))[:, None]                       # [Cmid_p,1]
    sh2 = (be2 + (b2 - m2) * s2).astype(jnp.float32)[:, None]        # [Cout,1]
    w1s = jnp.transpose(w1[:, :, 0, :] * s1[:, None, None], (0, 2, 1))
    w1s = jnp.pad(w1s, ((0, Cmid_p - Cmid), (0, 0), (0, Cin_p - Cin)))
    w1s = w1s.reshape(Cmid_p, k * Cin_p).astype(compute_dtype)       # [Cmid_p,k*Cin_p]
    w2s = jnp.transpose(w2[:, :, :, 0] * s2[:, None, None], (0, 2, 1))
    w2s = jnp.pad(w2s, ((0, 0), (0, 0), (0, Cmid_p - Cmid)))
    w2s = w2s.reshape(Cout, k * Cmid_p).astype(compute_dtype)        # [Cout,k*Cmid_p]

    # ---- W-pad, channel-pad, split into per-tile slabs + 2*pad halo rows --
    xw = jnp.pad(x, ((0, 0), (0, Cin_p - Cin), (0, 0), (pad, pad)))
    xw = xw.astype(compute_dtype)                                    # [N,Cin_p,H,Wp]
    x_tiles = xw.reshape(N, Cin_p, nt, th, Wp).transpose(0, 2, 1, 3, 4)
    x_tiles = x_tiles.reshape(N, nt, Cin_p, Lm)
    x_tiles = jnp.pad(x_tiles, ((0, 0), (0, 0), (0, 0), (0, pad)))   # [N,nt,Cin_p,Lblk]

    tiles = jnp.arange(nt)
    off = jnp.arange(pad)
    halo_rows = jnp.concatenate([tiles[:, None] * th - pad + off[None, :],
                                 (tiles[:, None] + 1) * th + off[None, :]],
                                axis=1)
    halo_rows = jnp.clip(halo_rows, 0, H - 1)   # boundary rows overwritten in-kernel
    x_halo = xw[:, :, halo_rows, :]             # [N,Cin_p,nt,2*pad,Wp]
    x_halo = x_halo.transpose(0, 2, 1, 3, 4).reshape(N, nt, Cin_p, Lh)

    precise = (out_dtype == jnp.float32)
    kernel = functools.partial(_cross_conv_kernel, k=k, pad=pad, Wp=Wp, th=th,
                               add=add, precise=precise)

    flops = 2 * N * H * Wp * k * (Cin * Cmid + Cmid * Cout)
    transcendentals = 2 * N * H * Wp * (Cmid + Cout)
    bytes_accessed = int(x_tiles.size * csz + x_halo.size * csz
                         + w1s.size * csz + w2s.size * csz
                         + (sh1.size + sh2.size) * 4
                         + N * nt * Cout * Lm * out_dtype.itemsize)

    out = pl.pallas_call(
        kernel,
        out_shape=jax.ShapeDtypeStruct((N, nt, Cout, Lm), out_dtype),
        grid_spec=pltpu.PrefetchScalarGridSpec(
            num_scalar_prefetch=0,
            grid=(N, nt),                      # batch x H-tiles, both parallel
            in_specs=[
                pl.BlockSpec((1, 1, Cin_p, Lblk), lambda n, i: (n, i, 0, 0)),
                pl.BlockSpec((1, 1, Cin_p, Lh), lambda n, i: (n, i, 0, 0)),
                pl.BlockSpec((Cmid_p, k * Cin_p), lambda n, i: (0, 0)),
                pl.BlockSpec((Cmid_p, 1), lambda n, i: (0, 0)),
                pl.BlockSpec((Cout, k * Cmid_p), lambda n, i: (0, 0)),
                pl.BlockSpec((Cout, 1), lambda n, i: (0, 0)),
            ],
            out_specs=pl.BlockSpec((1, 1, Cout, Lm), lambda n, i: (n, i, 0, 0)),
            scratch_shapes=[pltpu.VMEM((Cmid_p, Lp), compute_dtype)],
        ),
        compiler_params=pltpu.CompilerParams(
            dimension_semantics=("parallel", "parallel"),
            vmem_limit_bytes=48 * 1024 * 1024),
        cost_estimate=pl.CostEstimate(flops=flops,
                                      transcendentals=transcendentals,
                                      bytes_accessed=bytes_accessed),
    )(x_tiles, x_halo, w1s, sh1, w2s, sh2)

    # ---- un-tile, drop pad/garbage columns, apply stride -------------------
    # (a fusing consumer could take the tiled lane-dense layout directly)
    out = out.reshape(N, nt, Cout, th, Wp).transpose(0, 2, 1, 3, 4)
    out = out.reshape(N, Cout, H, Wp)
    H2 = (H + 2 * pad - k) // stride + 1
    W2 = (W + 2 * pad - k) // stride + 1
    out = out[:, :, 0:(H2 - 1) * stride + 1:stride,
                    0:(W2 - 1) * stride + 1:stride]
    return out


# ---------------------------------------------------------------------------
# Pure-JAX reference (correctness check only)
# ---------------------------------------------------------------------------
def _ref_conv_bn_mish(x, w, b, gamma, beta, mean, var, strides, padding):
    y = lax.conv_general_dilated(
        x, w, window_strides=strides, padding=padding,
        dimension_numbers=("NCHW", "OIHW", "NCHW"))
    y = y + b[None, :, None, None]
    y = (y - mean[None, :, None, None]) / jnp.sqrt(
        var[None, :, None, None] + BN_EPS)
    y = y * gamma[None, :, None, None] + beta[None, :, None, None]
    return y * jnp.tanh(jax.nn.softplus(y))


def _ref_cross_conv(x, params, *, kernel_size, stride, shortcut):
    k = kernel_size
    pad = k // 2
    w1, b1, g1, be1, m1, v1, w2, b2, g2, be2, m2, v2 = params
    y1 = _ref_conv_bn_mish(x, w1, b1, g1, be1, m1, v1,
                           (1, stride), [(0, 0), (pad, pad)])
    y2 = _ref_conv_bn_mish(y1, w2, b2, g2, be2, m2, v2,
                           (stride, 1), [(pad, pad), (0, 0)])
    add = shortcut and (x.shape[1] == w2.shape[0])
    return x + y2 if add else y2


def _make_params(key, in_channels, out_channels, c_, k):
    ks = jax.random.split(key, 12)
    w1 = 0.2 * jax.random.normal(ks[0], (c_, in_channels, 1, k), jnp.float32)
    b1 = 0.1 * jax.random.normal(ks[1], (c_,), jnp.float32)
    g1 = 1.0 + 0.1 * jax.random.normal(ks[2], (c_,), jnp.float32)
    be1 = 0.1 * jax.random.normal(ks[3], (c_,), jnp.float32)
    m1 = 0.1 * jax.random.normal(ks[4], (c_,), jnp.float32)
    v1 = 0.5 + jnp.abs(jax.random.normal(ks[5], (c_,), jnp.float32))
    w2 = 0.2 * jax.random.normal(ks[6], (out_channels, c_, k, 1), jnp.float32)
    b2 = 0.1 * jax.random.normal(ks[7], (out_channels,), jnp.float32)
    g2 = 1.0 + 0.1 * jax.random.normal(ks[8], (out_channels,), jnp.float32)
    be2 = 0.1 * jax.random.normal(ks[9], (out_channels,), jnp.float32)
    m2 = 0.1 * jax.random.normal(ks[10], (out_channels,), jnp.float32)
    v2 = 0.5 + jnp.abs(jax.random.normal(ks[11], (out_channels,), jnp.float32))
    return (w1, b1, g1, be1, m1, v1, w2, b2, g2, be2, m2, v2)


def _check(out, ref, tag, tol):
    assert out.shape == ref.shape, (tag, out.shape, ref.shape)
    num = jnp.linalg.norm(out.astype(jnp.float32) - ref.astype(jnp.float32))
    den = jnp.linalg.norm(ref.astype(jnp.float32)) + 1e-12
    rel = float(num / den)
    assert rel < tol, (tag, rel)


# ---------------------------------------------------------------------------
if __name__ == "__main__":
    key = jax.random.PRNGKey(0)
    kx, kp1, kp2, kp3 = jax.random.split(key, 4)

    N, Cin, H, W = 2, 4, 16, 16
    Cout, k = 8, 3

    x = jax.random.normal(kx, (N, Cin, H, W), jnp.float32)
    p1 = _make_params(kp1, Cin, Cout, int(Cout * 1.0), k)
    ref1 = _ref_cross_conv(x, p1, kernel_size=k, stride=1, shortcut=False)

    # 1) module defaults (stride=1, no shortcut, expansion=1, single H tile)
    out1 = jax.block_until_ready(
        cross_conv(x, p1, kernel_size=k, stride=1, shortcut=False))
    _check(out1, ref1, "default", 2e-2)

    # 2) fused shortcut add (Cin == Cout, expansion=0.5)
    p2 = _make_params(kp2, Cout, Cout, int(Cout * 0.5), k)
    x2 = jax.random.normal(kp2, (N, Cout, H, W), jnp.float32)
    out2 = jax.block_until_ready(
        cross_conv(x2, p2, kernel_size=k, stride=1, shortcut=True))
    ref2 = _ref_cross_conv(x2, p2, kernel_size=k, stride=1, shortcut=True)
    _check(out2, ref2, "shortcut", 2e-2)

    # 3) stride=2 downsample
    p3 = _make_params(kp3, Cin, Cout, Cout, k)
    out3 = jax.block_until_ready(
        cross_conv(x, p3, kernel_size=k, stride=2, shortcut=False))
    ref3 = _ref_cross_conv(x, p3, kernel_size=k, stride=2, shortcut=False)
    _check(out3, ref3, "stride2", 2e-2)

    # 4) bf16 activations/weights/output on the MXU (f32 accumulation)
    out4 = jax.block_until_ready(
        cross_conv(x, p1, kernel_size=k, stride=1, shortcut=False,
                   compute_dtype=jnp.bfloat16))
    assert out4.dtype == jnp.bfloat16
    _check(out4, ref1, "bf16", 3e-2)

    # 5) forced H-row tiling (4 tiles): exercises halo fetch + boundary zeroing
    out5 = jax.block_until_ready(
        cross_conv(x, p1, kernel_size=k, stride=1, shortcut=False, tile_rows=4))
    _check(out5, ref1, "tiled", 2e-2)

    # 6) H-row tiling combined with the fused shortcut add
    out6 = jax.block_until_ready(
        cross_conv(x2, p2, kernel_size=k, stride=1, shortcut=True, tile_rows=8))
    _check(out6, ref2, "tiled+shortcut", 2e-2)

    print("KERNEL_OK")
</pallas_src>

<mosaic_0001>
module attributes {stable_mosaic.version = 11 : i64} {
  func.func @_cross_conv_kernel(%arg0: i32, %arg1: i32, %arg2: memref<1x1x8x289xf32, #tpu.memory_space<vmem>>, %arg3: memref<1x1x8x36xf32, #tpu.memory_space<vmem>>, %arg4: memref<8x24xf32, #tpu.memory_space<vmem>>, %arg5: memref<8x1xf32, #tpu.memory_space<vmem>>, %arg6: memref<8x24xf32, #tpu.memory_space<vmem>>, %arg7: memref<8x1xf32, #tpu.memory_space<vmem>>, %arg8: memref<1x1x8x288xf32, #tpu.memory_space<vmem>>, %arg9: memref<8x324xf32, #tpu.memory_space<vmem>>) attributes {dimension_semantics = [#tpu.dimension_semantics<parallel>, #tpu.dimension_semantics<parallel>], iteration_bounds = array<i64: 2, 1>, scalar_prefetch = 0 : i64, scratch_operands = 1 : i64, tpu.core_type = #tpu.core_type<tc>, window_params = [{transform_indices = @transform_0, window_bounds = array<i64: 1, 1, 8, 289>}, {transform_indices = @transform_1, window_bounds = array<i64: 1, 1, 8, 36>}, {pipeline_mode = #tpu.pipeline_mode<synchronous>, transform_indices = @transform_2, window_bounds = array<i64: 8, 24>}, {pipeline_mode = #tpu.pipeline_mode<synchronous>, transform_indices = @transform_3, window_bounds = array<i64: 8, 1>}, {pipeline_mode = #tpu.pipeline_mode<synchronous>, transform_indices = @transform_4, window_bounds = array<i64: 8, 24>}, {pipeline_mode = #tpu.pipeline_mode<synchronous>, transform_indices = @transform_5, window_bounds = array<i64: 8, 1>}, {transform_indices = @transform_6, window_bounds = array<i64: 1, 1, 8, 288>}]} {
    %c0 = arith.constant 0 : index
    %c0_0 = arith.constant 0 : index
    %0 = vector.load %arg4[%c0, %c0_0] : memref<8x24xf32, #tpu.memory_space<vmem>>, vector<8x24xf32>
    %c0_1 = arith.constant 0 : index
    %c0_2 = arith.constant 0 : index
    %1 = vector.load %arg6[%c0_1, %c0_2] : memref<8x24xf32, #tpu.memory_space<vmem>>, vector<8x24xf32>
    %c0_3 = arith.constant 0 : index
    %c0_4 = arith.constant 0 : index
    %c0_5 = arith.constant 0 : index
    %c0_6 = arith.constant 0 : index
    %2 = vector.load %arg2[%c0_3, %c0_4, %c0_5, %c0_6] : memref<1x1x8x289xf32, #tpu.memory_space<vmem>>, vector<1x1x8x286xf32>
    %3 = vector.shape_cast %2 : vector<1x1x8x286xf32> to vector<8x286xf32>
    %c0_7 = arith.constant 0 : index
    %c0_8 = arith.constant 0 : index
    %c0_9 = arith.constant 0 : index
    %c1 = arith.constant 1 : index
    %4 = vector.load %arg2[%c0_7, %c0_8, %c0_9, %c1] : memref<1x1x8x289xf32, #tpu.memory_space<vmem>>, vector<1x1x8x286xf32>
    %5 = vector.shape_cast %4 : vector<1x1x8x286xf32> to vector<8x286xf32>
    %c0_10 = arith.constant 0 : index
    %c0_11 = arith.constant 0 : index
    %c0_12 = arith.constant 0 : index
    %c2 = arith.constant 2 : index
    %6 = vector.load %arg2[%c0_10, %c0_11, %c0_12, %c2] : memref<1x1x8x289xf32, #tpu.memory_space<vmem>>, vector<1x1x8x286xf32>
    %7 = vector.shape_cast %6 : vector<1x1x8x286xf32> to vector<8x286xf32>
    %8 = tpu.concatenate %3, %5, %7 in 0 : vector<8x286xf32>, vector<8x286xf32>, vector<8x286xf32> -> vector<24x286xf32>
    %cst = arith.constant dense<0.000000e+00> : vector<8x286xf32>
    %9 = tpu.matmul %0, %8, %cst {dimension_numbers = #tpu.dot_dimension_numbers<[1], [0], [0], [1], [0, 0, 1, 1], [], []>} : vector<8x24xf32>, vector<24x286xf32>, vector<8x286xf32> -> vector<8x286xf32>
    %c0_13 = arith.constant 0 : index
    %c0_14 = arith.constant 0 : index
    %10 = vector.load %arg5[%c0_13, %c0_14] : memref<8x1xf32, #tpu.memory_space<vmem>>, vector<8x1xf32>
    %11 = vector.broadcast %10 : vector<8x1xf32> to vector<8x286xf32>
    %12 = arith.addf %9, %11 : vector<8x286xf32>
    %cst_15 = arith.constant 2.000000e+01 : f32
    %13 = vector.broadcast %cst_15 : f32 to vector<8x286xf32>
    %14 = arith.minimumf %12, %13 : vector<8x286xf32>
    %15 = math.exp %14 : vector<8x286xf32>
    %cst_16 = arith.constant 2.000000e+00 : f32
    %16 = vector.broadcast %cst_16 : f32 to vector<8x286xf32>
    %17 = arith.addf %15, %16 : vector<8x286xf32>
    %18 = arith.mulf %15, %17 : vector<8x286xf32>
    %cst_17 = arith.constant 2.000000e+00 : f32
    %19 = vector.broadcast %cst_17 : f32 to vector<8x286xf32>
    %20 = arith.addf %18, %19 : vector<8x286xf32>
    %21 = tpu.reciprocal %20 {approx = true} : vector<8x286xf32> -> vector<8x286xf32>
    %22 = arith.mulf %20, %21 : vector<8x286xf32>
    %cst_18 = arith.constant 2.000000e+00 : f32
    %23 = vector.broadcast %cst_18 : f32 to vector<8x286xf32>
    %24 = arith.subf %23, %22 : vector<8x286xf32>
    %25 = arith.mulf %21, %24 : vector<8x286xf32>
    %26 = arith.mulf %18, %25 : vector<8x286xf32>
    %27 = arith.mulf %12, %26 : vector<8x286xf32>
    %c0_19 = arith.constant 0 : index
    %c18 = arith.constant 18 : index
    %28 = vector.load %arg9[%c0_19, %c18] : memref<8x324xf32, #tpu.memory_space<vmem>>, vector<8x286xf32>
    tpu.vector_store %arg9[%c0_19, %c18], %27 {strides = array<i32>} : memref<8x324xf32, #tpu.memory_space<vmem>>, vector<8x286xf32>,
    %c0_20 = arith.constant 0 : index
    %c0_21 = arith.constant 0 : index
    %c0_22 = arith.constant 0 : index
    %c0_23 = arith.constant 0 : index
    %29 = vector.load %arg3[%c0_20, %c0_21, %c0_22, %c0_23] : memref<1x1x8x36xf32, #tpu.memory_space<vmem>>, vector<1x1x8x34xf32>
    %30 = vector.shape_cast %29 : vector<1x1x8x34xf32> to vector<8x34xf32>
    %c0_24 = arith.constant 0 : index
    %c0_25 = arith.constant 0 : index
    %c0_26 = arith.constant 0 : index
    %c1_27 = arith.constant 1 : index
    %31 = vector.load %arg3[%c0_24, %c0_25, %c0_26, %c1_27] : memref<1x1x8x36xf32, #tpu.memory_space<vmem>>, vector<1x1x8x34xf32>
    %32 = vector.shape_cast %31 : vector<1x1x8x34xf32> to vector<8x34xf32>
    %c0_28 = arith.constant 0 : index
    %c0_29 = arith.constant 0 : index
    %c0_30 = arith.constant 0 : index
    %c2_31 = arith.constant 2 : index
    %33 = vector.load %arg3[%c0_28, %c0_29, %c0_30, %c2_31] : memref<1x1x8x36xf32, #tpu.memory_space<vmem>>, vector<1x1x8x34xf32>
    %34 = vector.shape_cast %33 : vector<1x1x8x34xf32> to vector<8x34xf32>
    %35 = tpu.concatenate %30, %32, %34 in 0 : vector<8x34xf32>, vector<8x34xf32>, vector<8x34xf32> -> vector<24x34xf32>
    %cst_32 = arith.constant dense<0.000000e+00> : vector<8x34xf32>
    %36 = tpu.matmul %0, %35, %cst_32 {dimension_numbers = #tpu.dot_dimension_numbers<[1], [0], [0], [1], [0, 0, 1, 1], [], []>} : vector<8x24xf32>, vector<24x34xf32>, vector<8x34xf32> -> vector<8x34xf32>
    %c0_33 = arith.constant 0 : index
    %c0_34 = arith.constant 0 : index
    %37 = vector.load %arg5[%c0_33, %c0_34] : memref<8x1xf32, #tpu.memory_space<vmem>>, vector<8x1xf32>
    %38 = vector.broadcast %37 : vector<8x1xf32> to vector<8x34xf32>
    %39 = arith.addf %36, %38 : vector<8x34xf32>
    %cst_35 = arith.constant 2.000000e+01 : f32
    %40 = vector.broadcast %cst_35 : f32 to vector<8x34xf32>
    %41 = arith.minimumf %39, %40 : vector<8x34xf32>
    %42 = math.exp %41 : vector<8x34xf32>
    %cst_36 = arith.constant 2.000000e+00 : f32
    %43 = vector.broadcast %cst_36 : f32 to vector<8x34xf32>
    %44 = arith.addf %42, %43 : vector<8x34xf32>
    %45 = arith.mulf %42, %44 : vector<8x34xf32>
    %cst_37 = arith.constant 2.000000e+00 : f32
    %46 = vector.broadcast %cst_37 : f32 to vector<8x34xf32>
    %47 = arith.addf %45, %46 : vector<8x34xf32>
    %48 = tpu.reciprocal %47 {approx = true} : vector<8x34xf32> -> vector<8x34xf32>
    %49 = arith.mulf %47, %48 : vector<8x34xf32>
    %cst_38 = arith.constant 2.000000e+00 : f32
    %50 = vector.broadcast %cst_38 : f32 to vector<8x34xf32>
    %51 = arith.subf %50, %49 : vector<8x34xf32>
    %52 = arith.mulf %48, %51 : vector<8x34xf32>
    %53 = arith.mulf %45, %52 : vector<8x34xf32>
    %54 = arith.mulf %39, %53 : vector<8x34xf32>
    %55 = vector.extract_strided_slice %54 {offsets = [0, 0], sizes = [8, 18], strides = [1, 1]} : vector<8x34xf32> to vector<8x18xf32>
    %c0_39 = arith.constant 0 : index
    %c0_40 = arith.constant 0 : index
    %56 = vector.load %arg9[%c0_39, %c0_40] : memref<8x324xf32, #tpu.memory_space<vmem>>, vector<8x18xf32>
    tpu.vector_store %arg9[%c0_39, %c0_40], %55 {strides = array<i32>} : memref<8x324xf32, #tpu.memory_space<vmem>>, vector<8x18xf32>,
    %57 = vector.extract_strided_slice %54 {offsets = [0, 18], sizes = [8, 16], strides = [1, 1]} : vector<8x34xf32> to vector<8x16xf32>
    %c0_41 = arith.constant 0 : index
    %c306 = arith.constant 306 : index
    %58 = vector.load %arg9[%c0_41, %c306] : memref<8x324xf32, #tpu.memory_space<vmem>>, vector<8x16xf32>
    tpu.vector_store %arg9[%c0_41, %c306], %57 {strides = array<i32>} : memref<8x324xf32, #tpu.memory_space<vmem>>, vector<8x16xf32>,
    %c0_i32 = arith.constant 0 : i32
    %59 = arith.cmpi eq, %arg1, %c0_i32 : i32
    %60 = arith.extui %59 : i1 to i32
    %c0_i32_42 = arith.constant 0 : i32
    %61 = arith.cmpi ne, %60, %c0_i32_42 : i32
    scf.if %61 {
      %cst_61 = arith.constant 0.000000e+00 : f32
      %91 = vector.broadcast %cst_61 : f32 to vector<8x18xf32>
      %c0_62 = arith.constant 0 : index
      %c0_63 = arith.constant 0 : index
      %92 = vector.load %arg9[%c0_62, %c0_63] : memref<8x324xf32, #tpu.memory_space<vmem>>, vector<8x18xf32>
      tpu.vector_store %arg9[%c0_62, %c0_63], %91 {strides = array<i32>} : memref<8x324xf32, #tpu.memory_space<vmem>>, vector<8x18xf32>,
    } else {
    }
    %c0_i32_43 = arith.constant 0 : i32
    %62 = arith.cmpi eq, %arg1, %c0_i32_43 : i32
    %63 = arith.extui %62 : i1 to i32
    %c0_i32_44 = arith.constant 0 : i32
    %64 = arith.cmpi ne, %63, %c0_i32_44 : i32
    scf.if %64 {
      %cst_61 = arith.constant 0.000000e+00 : f32
      %91 = vector.broadcast %cst_61 : f32 to vector<8x18xf32>
      %c0_62 = arith.constant 0 : index
      %c306_63 = arith.constant 306 : index
      %92 = vector.load %arg9[%c0_62, %c306_63] : memref<8x324xf32, #tpu.memory_space<vmem>>, vector<8x18xf32>
      tpu.vector_store %arg9[%c0_62, %c306_63], %91 {strides = array<i32>} : memref<8x324xf32, #tpu.memory_space<vmem>>, vector<8x18xf32>,
    } else {
    }
    %c0_45 = arith.constant 0 : index
    %c0_46 = arith.constant 0 : index
    %65 = vector.load %arg9[%c0_45, %c0_46] : memref<8x324xf32, #tpu.memory_space<vmem>>, vector<8x288xf32>
    %c0_47 = arith.constant 0 : index
    %c18_48 = arith.constant 18 : index
    %66 = vector.load %arg9[%c0_47, %c18_48] : memref<8x324xf32, #tpu.memory_space<vmem>>, vector<8x288xf32>
    %c0_49 = arith.constant 0 : index
    %c36 = arith.constant 36 : index
    %67 = vector.load %arg9[%c0_49, %c36] : memref<8x324xf32, #tpu.memory_space<vmem>>, vector<8x288xf32>
    %68 = tpu.concatenate %65, %66, %67 in 0 : vector<8x288xf32>, vector<8x288xf32>, vector<8x288xf32> -> vector<24x288xf32>
    %cst_50 = arith.constant dense<0.000000e+00> : vector<8x288xf32>
    %69 = tpu.matmul %1, %68, %cst_50 {dimension_numbers = #tpu.dot_dimension_numbers<[1], [0], [0], [1], [0, 0, 1, 1], [], []>} : vector<8x24xf32>, vector<24x288xf32>, vector<8x288xf32> -> vector<8x288xf32>
    %c0_51 = arith.constant 0 : index
    %c0_52 = arith.constant 0 : index
    %70 = vector.load %arg7[%c0_51, %c0_52] : memref<8x1xf32, #tpu.memory_space<vmem>>, vector<8x1xf32>
    %71 = vector.broadcast %70 : vector<8x1xf32> to vector<8x288xf32>
    %72 = arith.addf %69, %71 : vector<8x288xf32>
    %cst_53 = arith.constant 2.000000e+01 : f32
    %73 = vector.broadcast %cst_53 : f32 to vector<8x288xf32>
    %74 = arith.minimumf %72, %73 : vector<8x288xf32>
    %75 = math.exp %74 : vector<8x288xf32>
    %cst_54 = arith.constant 2.000000e+00 : f32
    %76 = vector.broadcast %cst_54 : f32 to vector<8x288xf32>
    %77 = arith.addf %75, %76 : vector<8x288xf32>
    %78 = arith.mulf %75, %77 : vector<8x288xf32>
    %cst_55 = arith.constant 2.000000e+00 : f32
    %79 = vector.broadcast %cst_55 : f32 to vector<8x288xf32>
    %80 = arith.addf %78, %79 : vector<8x288xf32>
    %81 = tpu.reciprocal %80 {approx = true} : vector<8x288xf32> -> vector<8x288xf32>
    %82 = arith.mulf %80, %81 : vector<8x288xf32>
    %cst_56 = arith.constant 2.000000e+00 : f32
    %83 = vector.broadcast %cst_56 : f32 to vector<8x288xf32>
    %84 = arith.subf %83, %82 : vector<8x288xf32>
    %85 = arith.mulf %81, %84 : vector<8x288xf32>
    %86 = arith.mulf %78, %85 : vector<8x288xf32>
    %87 = arith.mulf %72, %86 : vector<8x288xf32>
    %c0_57 = arith.constant 0 : index
    %c0_58 = arith.constant 0 : index
    %c0_59 = arith.constant 0 : index
    %c0_60 = arith.constant 0 : index
    %88 = vector.load %arg8[%c0_57, %c0_58, %c0_59, %c0_60] : memref<1x1x8x288xf32, #tpu.memory_space<vmem>>, vector<1x1x8x288xf32>
    %89 = vector.shape_cast %88 : vector<1x1x8x288xf32> to vector<8x288xf32>
    %90 = vector.shape_cast %87 : vector<8x288xf32> to vector<1x1x8x288xf32>
    tpu.vector_store %arg8[%c0_57, %c0_58, %c0_59, %c0_60], %90 {strides = array<i32>} : memref<1x1x8x288xf32, #tpu.memory_space<vmem>>, vector<1x1x8x288xf32>,
    return
  }
  func.func @transform_0(%arg0: i32, %arg1: i32) -> (i32, i32, i32, i32) {
    %c0_i32 = arith.constant 0 : i32
    %c0_i32_0 = arith.constant 0 : i32
    %c0_i32_1 = arith.constant 0 : i32
    return %arg0, %arg1, %c0_i32, %c0_i32_0 : i32, i32, i32, i32
  }
  func.func @transform_1(%arg0: i32, %arg1: i32) -> (i32, i32, i32, i32) {
    %c0_i32 = arith.constant 0 : i32
    %c0_i32_0 = arith.constant 0 : i32
    %c0_i32_1 = arith.constant 0 : i32
    return %arg0, %arg1, %c0_i32, %c0_i32_0 : i32, i32, i32, i32
  }
  func.func @transform_2(%arg0: i32, %arg1: i32) -> (i32, i32) {
    %c0_i32 = arith.constant 0 : i32
    %c0_i32_0 = arith.constant 0 : i32
    %c0_i32_1 = arith.constant 0 : i32
    return %c0_i32, %c0_i32_0 : i32, i32
  }
  func.func @transform_3(%arg0: i32, %arg1: i32) -> (i32, i32) {
    %c0_i32 = arith.constant 0 : i32
    %c0_i32_0 = arith.constant 0 : i32
    %c0_i32_1 = arith.constant 0 : i32
    return %c0_i32, %c0_i32_0 : i32, i32
  }
  func.func @transform_4(%arg0: i32, %arg1: i32) -> (i32, i32) {
    %c0_i32 = arith.constant 0 : i32
    %c0_i32_0 = arith.constant 0 : i32
    %c0_i32_1 = arith.constant 0 : i32
    return %c0_i32, %c0_i32_0 : i32, i32
  }
  func.func @transform_5(%arg0: i32, %arg1: i32) -> (i32, i32) {
    %c0_i32 = arith.constant 0 : i32
    %c0_i32_0 = arith.constant 0 : i32
    %c0_i32_1 = arith.constant 0 : i32
    return %c0_i32, %c0_i32_0 : i32, i32
  }
  func.func @transform_6(%arg0: i32, %arg1: i32) -> (i32, i32, i32, i32) {
    %c0_i32 = arith.constant 0 : i32
    %c0_i32_0 = arith.constant 0 : i32
    %c0_i32_1 = arith.constant 0 : i32
    return %arg0, %arg1, %c0_i32, %c0_i32_0 : i32, i32, i32, i32
  }
}

</mosaic_0001>

<llo_original>
// kernel: tpu_custom_call.1
$region0: #{tpu_custom_call.1}
  #allocation0 [shape = 'u32[]', space=smem, size = 0x4, offset = 0x4, fixed_abs, tag = 'smem constant byte address 0x4 - core index']
  #allocation1 [shape = 'u32[144,128]{1,0:T(1,128)}', space=vmem, size = 0x12000, scoped, tag = 'internal scratch']
  #allocation2 [shape = 'f32[8,324]{1,0:T(8,128)}', space=vmem, size = 0x3000, scoped, tag = 'scratch operand']
  %s0 = inlined_call_operand.hbm [shape: f32[2,1,8,289], index: 0, kind: input, shape index: {}]
  %s1 = inlined_call_operand.vmem [shape: f32[2,1,8,36], index: 1, kind: input, shape index: {}]
  %s2 = inlined_call_operand.vmem [shape: f32[8,24], index: 2, kind: input, shape index: {}]
  %s3 = inlined_call_operand.vmem [shape: f32[8,1], index: 3, kind: input, shape index: {}]
  %s4 = inlined_call_operand.vmem [shape: f32[8,24], index: 4, kind: input, shape index: {}]
  %s5 = inlined_call_operand.vmem [shape: f32[8,1], index: 5, kind: input, shape index: {}]
  %s6 = inlined_call_operand.hbm [shape: f32[2,1,8,288], index: 6, kind: output, shape index: {}]
  %s7 = sld [smem:[#allocation0]]
  $region65: #{tpu_custom_call.1} parent=0
    _
  %s9 = ssub.s32 1, %s7
  %s10 = scalar_select 0, %s9, %s7
  $region1: #{tpu_custom_call.1} parent=0
    #allocation3 [shape = 'u8[24576]{0}', space=vmem, size = 0x6000, scoped, tag = 'input window, operand 0']
    #allocation4 [shape = 's32[2]{0}', space=sflag, size = 0x8, scoped, tag = 'scoped memory for tpu_custom_call.1']
    #allocation5 [shape = 's32[2]{0}', space=sflag, size = 0x8, scoped, tag = 'scoped memory for tpu_custom_call.1']
    #allocation6 [shape = 'u8[24576]{0}', space=vmem, size = 0x6000, scoped, tag = 'output window, operand 0']
    %11 = vsyncpa [#allocation4], 0
    %s12 = scalar_lea.sflag [#allocation4], 1
    %13 = vsyncpa %s12, 0
    %14 = vsyncpa [#allocation5], 0
    %s15 = scalar_lea.sflag [#allocation5], 1
    %16 = vsyncpa %s15, 0
    loop: start=0, step=1, limit=4
    $region2: #{tpu_custom_call.1} parent=1 // loop_pre_header
      _
    $region3: #{tpu_custom_call.1} parent=1 // loop_header
      %s18 = sphi 0, %s22
      %p19 = scmp.ge.s32.totalorder %s18, 4
      %s25 = sphi 0, %s37
      %s26 = sphi 0, %s33
      %s27 = sphi 0, %s25
      %s28 = sphi 0, %s26
      %s29 = sphi 0, %s27
      %s30 = sphi 0, %s28
      %s42 = sphi 0, %s44
      %s45 = sphi 0, %s42
      %s46 = sphi 0, %s45
      %s62 = sphi 0, %s46
      %s70 = sphi 0, %s72
      %s73 = sphi 0, %s70
      %s74 = sphi 0, %s73
      %s90 = sphi 0, %s74
      %s94 = sphi 0, %s94
      %s96 = sphi 0, %s94
      %s97 = sphi 0, %s96
      %s111 = sphi 0, %s97
      %s115 = sphi 0, %s115
      %s117 = sphi 0, %s115
      %s118 = sphi 0, %s117
      %s132 = sphi 0, %s118
      %s136 = sphi 0, %s136
      %s138 = sphi 0, %s136
      %s139 = sphi 0, %s138
      %s153 = sphi 0, %s139
      %s157 = sphi 0, %s157
      %s159 = sphi 0, %s157
      %s160 = sphi 0, %s159
      %s174 = sphi 0, %s160
      %s182 = sphi 0, %s184
      %s185 = sphi 0, %s182
      %s186 = sphi 0, %s185
      %s202 = sphi 0, %s186
    $region4: #{tpu_custom_call.1} parent=1 // loop_header_branch
      %21 = sbr.rel (%p19) target = $region8
    $region5: #{tpu_custom_call.1} parent=1 // loop_body
      %s23 = ssub.s32 %s18, 1
      %s24 = ssub.s32 %s18, 2
      %s31 = sadd.s32 1, %s26
      %p32 = scmp.ge.s32.totalorder %s31, 1
      %s33 = scalar_select %p32, 0, %s31
      %s34 = sadd.s32 1, %s25
      %s35 = scalar_select %p32, %s34, %s25
      %p36 = scmp.ge.s32.totalorder %s35, 2
      %s37 = scalar_select %p36, 0, %s35
      %s38 = ssub.s32 %s25, %s37
      %s39 = ssub.s32 %s26, %s33
      %s40 = sor.u32 %s38, %s39
      %p41 = scmp.eq.s32.totalorder %s40, 0
      %s43 = sadd.s32 %s42, 1
      %s44 = scalar_select %p41, %s42, %s43
      %p47 = pneg %p41
      %p48 = scmp.eq.s32.totalorder %s18, 1
      %p49 = por %p47, %p48
      %p50 = scmp.ne.s32.totalorder %s42, %s45
      %p51 = scmp.eq.s32.totalorder %s18, 0
      %p52 = por %p50, %p51
      %p53 = scmp.ne.s32.totalorder %s42, %s45
      %p54 = scmp.eq.s32.totalorder %s23, 1
      %p55 = por %p53, %p54
      %p56 = scmp.ne.s32.totalorder %s45, %s46
      %p57 = scmp.eq.s32.totalorder %s23, 0
      %p58 = por %p56, %p57
      %p59 = scmp.ne.s32.totalorder %s45, %s46
      %p60 = scmp.eq.s32.totalorder %s24, 1
      %p61 = por %p59, %p60
      %p63 = scmp.ne.s32.totalorder %s46, %s62
      %p64 = scmp.eq.s32.totalorder %s24, 0
      %p65 = por %p63, %p64
      %s66 = ssub.s32 %s25, %s37
      %s67 = ssub.s32 %s26, %s33
      %s68 = sor.u32 %s66, %s67
      %p69 = scmp.eq.s32.totalorder %s68, 0
      %s71 = sadd.s32 %s70, 1
      %s72 = scalar_select %p69, %s70, %s71
      %p75 = pneg %p69
      %p76 = scmp.eq.s32.totalorder %s18, 1
      %p77 = por %p75, %p76
      %p78 = scmp.ne.s32.totalorder %s70, %s73
      %p79 = scmp.eq.s32.totalorder %s18, 0
      %p80 = por %p78, %p79
      %p81 = scmp.ne.s32.totalorder %s70, %s73
      %p82 = scmp.eq.s32.totalorder %s23, 1
      %p83 = por %p81, %p82
      %p84 = scmp.ne.s32.totalorder %s73, %s74
      %p85 = scmp.eq.s32.totalorder %s23, 0
      %p86 = por %p84, %p85
      %p87 = scmp.ne.s32.totalorder %s73, %s74
      %p88 = scmp.eq.s32.totalorder %s24, 1
      %p89 = por %p87, %p88
      %p91 = scmp.ne.s32.totalorder %s74, %s90
      %p92 = scmp.eq.s32.totalorder %s24, 0
      %p93 = por %p91, %p92
      %s95 = sadd.s32 %s94, 1
      %p98 = scmp.eq.s32.totalorder %s18, 1
      %p99 = scmp.ne.s32.totalorder %s94, %s96
      %p100 = scmp.eq.s32.totalorder %s18, 0
      %p101 = por %p99, %p100
      %p102 = scmp.ne.s32.totalorder %s94, %s96
      %p103 = scmp.eq.s32.totalorder %s23, 1
      %p104 = por %p102, %p103
      %p105 = scmp.ne.s32.totalorder %s96, %s97
      %p106 = scmp.eq.s32.totalorder %s23, 0
      %p107 = por %p105, %p106
      %p108 = scmp.ne.s32.totalorder %s96, %s97
      %p109 = scmp.eq.s32.totalorder %s24, 1
      %p110 = por %p108, %p109
      %p112 = scmp.ne.s32.totalorder %s97, %s111
      %p113 = scmp.eq.s32.totalorder %s24, 0
      %p114 = por %p112, %p113
      %s116 = sadd.s32 %s115, 1
      %p119 = scmp.eq.s32.totalorder %s18, 1
      %p120 = scmp.ne.s32.totalorder %s115, %s117
      %p121 = scmp.eq.s32.totalorder %s18, 0
      %p122 = por %p120, %p121
      %p123 = scmp.ne.s32.totalorder %s115, %s117
      %p124 = scmp.eq.s32.totalorder %s23, 1
      %p125 = por %p123, %p124
      %p126 = scmp.ne.s32.totalorder %s117, %s118
      %p127 = scmp.eq.s32.totalorder %s23, 0
      %p128 = por %p126, %p127
      %p129 = scmp.ne.s32.totalorder %s117, %s118
      %p130 = scmp.eq.s32.totalorder %s24, 1
      %p131 = por %p129, %p130
      %p133 = scmp.ne.s32.totalorder %s118, %s132
      %p134 = scmp.eq.s32.totalorder %s24, 0
      %p135 = por %p133, %p134
      %s137 = sadd.s32 %s136, 1
      %p140 = scmp.eq.s32.totalorder %s18, 1
      %p141 = scmp.ne.s32.totalorder %s136, %s138
      %p142 = scmp.eq.s32.totalorder %s18, 0
      %p143 = por %p141, %p142
      %p144 = scmp.ne.s32.totalorder %s136, %s138
      %p145 = scmp.eq.s32.totalorder %s23, 1
      %p146 = por %p144, %p145
      %p147 = scmp.ne.s32.totalorder %s138, %s139
      %p148 = scmp.eq.s32.totalorder %s23, 0
      %p149 = por %p147, %p148
      %p150 = scmp.ne.s32.totalorder %s138, %s139
      %p151 = scmp.eq.s32.totalorder %s24, 1
      %p152 = por %p150, %p151
      %p154 = scmp.ne.s32.totalorder %s139, %s153
      %p155 = scmp.eq.s32.totalorder %s24, 0
      %p156 = por %p154, %p155
      %s158 = sadd.s32 %s157, 1
      %p161 = scmp.eq.s32.totalorder %s18, 1
      %p162 = scmp.ne.s32.totalorder %s157, %s159
      %p163 = scmp.eq.s32.totalorder %s18, 0
      %p164 = por %p162, %p163
      %p165 = scmp.ne.s32.totalorder %s157, %s159
      %p166 = scmp.eq.s32.totalorder %s23, 1
      %p167 = por %p165, %p166
      %p168 = scmp.ne.s32.totalorder %s159, %s160
      %p169 = scmp.eq.s32.totalorder %s23, 0
      %p170 = por %p168, %p169
      %p171 = scmp.ne.s32.totalorder %s159, %s160
      %p172 = scmp.eq.s32.totalorder %s24, 1
      %p173 = por %p171, %p172
      %p175 = scmp.ne.s32.totalorder %s160, %s174
      %p176 = scmp.eq.s32.totalorder %s24, 0
      %p177 = por %p175, %p176
      %s178 = ssub.s32 %s25, %s37
      %s179 = ssub.s32 %s26, %s33
      %s180 = sor.u32 %s178, %s179
      %p181 = scmp.eq.s32.totalorder %s180, 0
      %s183 = sadd.s32 %s182, 1
      %s184 = scalar_select %p181, %s182, %s183
      %p187 = pneg %p181
      %p188 = scmp.eq.s32.totalorder %s18, 1
      %p189 = por %p187, %p188
      %p190 = scmp.ne.s32.totalorder %s182, %s185
      %p191 = scmp.eq.s32.totalorder %s18, 0
      %p192 = por %p190, %p191
      %p193 = scmp.ne.s32.totalorder %s182, %s185
      %p194 = scmp.eq.s32.totalorder %s23, 1
      %p195 = por %p193, %p194
      %p196 = scmp.ne.s32.totalorder %s185, %s186
      %p197 = scmp.eq.s32.totalorder %s23, 0
      %p198 = por %p196, %p197
      %p199 = scmp.ne.s32.totalorder %s185, %s186
      %p200 = scmp.eq.s32.totalorder %s24, 1
      %p201 = por %p199, %p200
      %p203 = scmp.ne.s32.totalorder %s186, %s202
      %p204 = scmp.eq.s32.totalorder %s24, 0
      %p205 = por %p203, %p204
      %p206 = scmp.le.s32.totalorder 1, %s18
      %p207 = scmp.lt.s32.totalorder %s18, 3
      %p208 = pnand %p206, %p207
      %p209 = pneg %p208
      // Predicated region
      $region9: #{tpu_custom_call.1} parent=5 // pred_check
        _
      $region10: #{tpu_custom_call.1} parent=5 // pred_check_branch
        %211 = sbr.rel (%p208) target = $region12
      $region11: #{tpu_custom_call.1} parent=5 // pred_region
        %s212 = ssub.s32 %s18, 1
        // Predicated region
        $region13: #{tpu_custom_call.1} parent=11 // pred_check
          %p213 = pneg %p107
        $region14: #{tpu_custom_call.1} parent=11 // pred_check_branch
          %215 = sbr.rel (%p213) target = $region16
        $region15: #{tpu_custom_call.1} parent=11 // pred_region
          _
        $region16: #{tpu_custom_call.1} parent=11 // pred_fallthru
          _
        // Predicated region
        $region17: #{tpu_custom_call.1} parent=11 // pred_check
          %p216 = pneg %p128
        $region18: #{tpu_custom_call.1} parent=11 // pred_check_branch
          %218 = sbr.rel (%p216) target = $region20
        $region19: #{tpu_custom_call.1} parent=11 // pred_region
          _
        $region20: #{tpu_custom_call.1} parent=11 // pred_fallthru
          _
        // Predicated region
        $region21: #{tpu_custom_call.1} parent=11 // pred_check
          %p219 = pneg %p149
        $region22: #{tpu_custom_call.1} parent=11 // pred_check_branch
          %221 = sbr.rel (%p219) target = $region24
        $region23: #{tpu_custom_call.1} parent=11 // pred_region
          _
        $region24: #{tpu_custom_call.1} parent=11 // pred_fallthru
          _
        // Predicated region
        $region25: #{tpu_custom_call.1} parent=11 // pred_check
          %p222 = pneg %p170
        $region26: #{tpu_custom_call.1} parent=11 // pred_check_branch
          %224 = sbr.rel (%p222) target = $region28
        $region27: #{tpu_custom_call.1} parent=11 // pred_region
          _
        $region28: #{tpu_custom_call.1} parent=11 // pred_fallthru
          _
      $region12: #{tpu_custom_call.1} parent=5 // pred_fallthru
        _
      %p225 = scmp.lt.s32.totalorder %s18, 2
      // Predicated region
      $region29: #{tpu_custom_call.1} parent=5 // pred_check
        %p226 = pneg %p225
      $region30: #{tpu_custom_call.1} parent=5 // pred_check_branch
        %228 = sbr.rel (%p226) target = $region32
      $region31: #{tpu_custom_call.1} parent=5 // pred_region
        // Predicated region
        $region33: #{tpu_custom_call.1} parent=31 // pred_check
          %p229 = pneg %p52
        $region34: #{tpu_custom_call.1} parent=31 // pred_check_branch
          %231 = sbr.rel (%p229) target = $region36
        $region35: #{tpu_custom_call.1} parent=31 // pred_region
          %s232 = sand.u32 %s42, 1
          %s233 = scalar_lea.sflag [#allocation4], %s232
          %s234 = sand.u32 %s42, 1
          %s235 = smul.addr %s234, 24
          %s236 = scalar_lea.vmem [#allocation3], %s235
          %s238 = ssub.s32 384, 384
          %239 = vsyncadd %s233, %s238
          %s240 = smul.addr %s26, 3
          %s241 = smul.addr %s25, 3
          %s242 = sadd.s32 %s240, %s241
          %s243 = smul.addr %s242, 128
          %s244 = scalar_lea.hbm %s0, %s243
          %s246 = sshll.u32 %s236, 4
          %s247 = int_to_ptr.vmem [resolvable:$true] %s246
          %249 = dma.hbm_to_vmem [thread:$0]  %s244, 384, %s247, %s233
        $region36: #{tpu_custom_call.1} parent=31 // pred_fallthru
          _
        // Predicated region
        $region37: #{tpu_custom_call.1} parent=31 // pred_check
          %p250 = pneg %p80
        $region38: #{tpu_custom_call.1} parent=31 // pred_check_branch
          %252 = sbr.rel (%p250) target = $region40
        $region39: #{tpu_custom_call.1} parent=31 // pred_region
          %p253 = scmp.lt.s32.totalorder %s25, 1
          %s254 = scalar_select %p253, %s25, 1
          %p255 = scmp.lt.s32.totalorder %s26, 0
          %s256 = scalar_select %p255, %s26, 0
          %s257 = sadd.s32 %s256, %s254
          %s258 = smul.addr %s257, 8
          %s259 = scalar_lea.vmem %s1, %s258
        $region40: #{tpu_custom_call.1} parent=31 // pred_fallthru
          _
      $region32: #{tpu_custom_call.1} parent=5 // pred_fallthru
        _
      %p260 = scmp.le.s32.totalorder 1, %s18
      %p261 = scmp.lt.s32.totalorder %s18, 3
      %p262 = pnand %p260, %p261
      %p263 = pneg %p262
      // Predicated region
      $region41: #{tpu_custom_call.1} parent=5 // pred_check
        _
      $region42: #{tpu_custom_call.1} parent=5 // pred_check_branch
        %265 = sbr.rel (%p262) target = $region44
      $region43: #{tpu_custom_call.1} parent=5 // pred_region
        %s266 = ssub.s32 %s18, 1
        %s267 = sand.u32 %s45, 1
        %s268 = scalar_lea.sflag [#allocation4], %s267
        %s269 = sand.u32 %s45, 1
        %s270 = smul.addr %s269, 24
        %s271 = scalar_lea.vmem [#allocation3], %s270
        // Predicated region
        $region45: #{tpu_custom_call.1} parent=43 // pred_check
          %p272 = pneg %p58
        $region46: #{tpu_custom_call.1} parent=43 // pred_check_branch
          %274 = sbr.rel (%p272) target = $region48
        $region47: #{tpu_custom_call.1} parent=43 // pred_region
          %275 = dma.done %s268, 384
        $region48: #{tpu_custom_call.1} parent=43 // pred_fallthru
          _
        %s276 = sand.u32 %s45, 1
        %s277 = scalar_lea.sflag [#allocation4], %s276
        %s278 = sand.u32 %s45, 1
        %s279 = smul.addr %s278, 24
        %s280 = scalar_lea.vmem [#allocation3], %s279
        %p281 = pneg %p58
        %p282 = pneg %p55
        %p283 = scmp.lt.s32.totalorder %s27, 1
        %s284 = scalar_select %p283, %s27, 1
        %p285 = scmp.lt.s32.totalorder %s28, 0
        %s286 = scalar_select %p285, %s28, 0
        %s287 = sadd.s32 %s286, %s284
        %s288 = smul.addr %s287, 8
        %s289 = scalar_lea.vmem %s1, %s288
        %p290 = pneg %p86
        %p291 = pneg %p83
        %p292 = pneg %p107
        %p293 = pneg %p104
        %p294 = pneg %p128
        %p295 = pneg %p125
        %p296 = pneg %p149
        %p297 = pneg %p146
        %p298 = pneg %p170
        %p299 = pneg %p167
        %p300 = pneg %p198
        %p301 = pneg %p195
        %s302 = sand.u32 %s185, 1
        %s303 = scalar_lea.sflag [#allocation5], %s302
        %s304 = sand.u32 %s185, 1
        %s305 = smul.addr %s304, 24
        %s306 = scalar_lea.vmem [#allocation6], %s305
        %p307 = scmp.lt.s32.totalorder %s27, 1
        %s308 = scalar_select %p307, %s27, 1
        %p309 = scmp.lt.s32.totalorder %s28, 0
        %s310 = scalar_select %p309, %s28, 0
        %s311 = sadd.s32 %s310, %s308
        %s312 = smul.addr %s311, 8
        %s313 = scalar_lea.vmem %s1, %s312
        %v314 = vld [vmem:[%s2] sm:$0xff]
        %v315 = vld [vmem:[%s4] sm:$0xff]
        %v316 = vld [vmem:[%s271] sm:$0xff]
        %v317 = vld [vmem:[%s271 + $0x8] sm:$0xff]
        %v318 = vld [vmem:[%s271 + $0x10] sm:$0xff]
        %322 = vrot.lane.b32.xlu0 %v316, 127
        %v323 = vpop.permute.xlu0 %322
        %324 = vrot.lane.b32.xlu0 %v317, 127
        %v325 = vpop.permute.xlu0 %324
        %326 = vrot.lane.b32.xlu0 %v318, 127
        %v327 = vpop.permute.xlu0 %326
        %vm328 = vcmask 1039360
        %v329 = vsel %vm328, %v323, %v325
        %v330 = vsel %vm328, %v325, %v327
        %334 = vrot.lane.b32.xlu0 %v316, 126
        %v335 = vpop.permute.xlu0 %334
        %336 = vrot.lane.b32.xlu0 %v317, 126
        %v337 = vpop.permute.xlu0 %336
        %338 = vrot.lane.b32.xlu0 %v318, 126
        %v339 = vpop.permute.xlu0 %338
        %vm340 = vcmask 1031168
        %v341 = vsel %vm340, %v335, %v337
        %v342 = vsel %vm340, %v337, %v339
        %v346 = vld [vmem:[%s3] sm:$0xff]
        %348 = vset.pattern.permute.xlu0 0
        %349 = vperm.xlu0 %348, %v346
        %v350 = vpop.permute.xlu0 %349
        %vm352 = vcmask 195584
        %v354 = vsel %vm352, %v314, 0
        %356 = vmatprep.subr.mxu0 %v317
        %357 = vmatpush1.msra.mxu0 %v316
        %358 = vmatprep.subr.mxu0 %v330
        %359 = vmatpush1.msra.mxu0 %v329
        %360 = vmatprep.subr.mxu0 %v342
        %361 = vmatpush1.msra.mxu0 %v341
        %362 = vmatprep.subr.mxu0 0.0
        %363 = vmatpush1.msra.mxu0 0.0
        %364 = vmatprep.subr.mxu0 0.0
        %365 = vmatpush1.msra.mxu0 0.0
        %366 = vmatprep.subr.mxu0 0.0
        %367 = vmatpush1.msra.mxu0 0.0
        %368 = vmatprep.subr.mxu0 0.0
        %369 = vmatpush1.msra.mxu0 0.0
        %370 = vmatprep.subr.mxu0 0.0
        %371 = vmatpush1.msra.mxu0 0.0
        %372 = vmatprep.subr.mxu0 0.0
        %373 = vmatpush1.msra.mxu0 0.0
        %374 = vmatprep.subr.mxu0 0.0
        %375 = vmatpush1.msra.mxu0 0.0
        %376 = vmatprep.subr.mxu0 0.0
        %377 = vmatpush1.msra.mxu0 0.0
        %378 = vmatprep.subr.mxu0 0.0
        %379 = vmatpush1.msra.mxu0 0.0
        %380 = vmatprep.subr.mxu0 0.0
        %381 = vmatpush1.msra.mxu0 0.0
        %382 = vmatprep.subr.mxu0 0.0
        %383 = vmatpush1.msra.mxu0 0.0
        %384 = vmatprep.subr.mxu0 0.0
        %385 = vmatpush1.msra.mxu0 0.0
        %386 = vmatprep.subr.mxu0 0.0
        %387 = vmatpush1.msra.mxu0 0.0
        %388 = vmatprep.subr.mxu0 0.0
        %389 = vmatpush1.msra.mxu0 0.0
        %390 = vmatprep.subr.mxu0 0.0
        %391 = vmatpush1.msra.mxu0 0.0
        %392 = vmatprep.subr.mxu0 0.0
        %393 = vmatpush1.msra.mxu0 0.0
        %394 = vmatprep.subr.mxu0 0.0
        %395 = vmatpush1.msra.mxu0 0.0
        %396 = vmatprep.subr.mxu0 0.0
        %397 = vmatpush1.msra.mxu0 0.0
        %398 = vmatprep.subr.mxu0 0.0
        %399 = vmatpush1.msra.mxu0 0.0
        %400 = vmatprep.subr.mxu0 0.0
        %401 = vmatpush1.msra.mxu0 0.0
        %402 = vmatprep.subr.mxu0 0.0
        %403 = vmatpush1.msra.mxu0 0.0
        %404 = vmatprep.subr.mxu0 0.0
        %405 = vmatpush1.msra.mxu0 0.0
        %406 = vmatprep.subr.mxu0 0.0
        %407 = vmatpush1.msra.mxu0 0.0
        %408 = vmatprep.subr.mxu0 0.0
        %409 = vmatpush1.msra.mxu0 0.0
        %410 = vmatprep.subr.mxu0 0.0
        %411 = vmatpush1.msra.mxu0 0.0
        %412 = vmatprep.subr.mxu0 0.0
        %413 = vmatpush1.msra.mxu0 0.0
        %414 = vmatprep.subr.mxu0 0.0
        %415 = vmatpush1.msra.mxu0 0.0
        %416 = vmatprep.subr.mxu0 0.0
        %417 = vmatpush1.msra.mxu0 0.0
        %418 = vmatprep.subr.mxu0 0.0
        %419 = vmatpush1.msra.mxu0 0.0
        %420 = vmatprep.mubr.f32.mxu0 0.0
        %421 = vmatmul.mubr.f32.gmra.mrb[0].mxu0 %v354
        %v422 = vpop.f32.mrb[0].mxu0
        %v423 = vadd.f32 %v350, %v422
        %v424 = vpop.f32.mrb[0].mxu0
        %v425 = vadd.f32 %v350, %v424
        %426 = vdwg.mxu0
        %427 = vmatprep.subr.mxu0 0.0
        %428 = vmatpush1.msra.mxu0 %v318
        %429 = vmatprep.subr.mxu0 0.0
        %430 = vmatpush1.msra.mxu0 %v327
        %431 = vmatprep.subr.mxu0 0.0
        %432 = vmatpush1.msra.mxu0 %v339
        %433 = vmatprep.subr.mxu0 0.0
        %434 = vmatpush1.msra.mxu0 0.0
        %435 = vmatprep.subr.mxu0 0.0
        %436 = vmatpush1.msra.mxu0 0.0
        %437 = vmatprep.subr.mxu0 0.0
        %438 = vmatpush1.msra.mxu0 0.0
        %439 = vmatprep.subr.mxu0 0.0
        %440 = vmatpush1.msra.mxu0 0.0
        %441 = vmatprep.subr.mxu0 0.0
        %442 = vmatpush1.msra.mxu0 0.0
        %443 = vmatprep.subr.mxu0 0.0
        %444 = vmatpush1.msra.mxu0 0.0
        %445 = vmatprep.subr.mxu0 0.0
        %446 = vmatpush1.msra.mxu0 0.0
        %447 = vmatprep.subr.mxu0 0.0
        %448 = vmatpush1.msra.mxu0 0.0
        %449 = vmatprep.subr.mxu0 0.0
        %450 = vmatpush1.msra.mxu0 0.0
        %451 = vmatprep.subr.mxu0 0.0
        %452 = vmatpush1.msra.mxu0 0.0
        %453 = vmatprep.subr.mxu0 0.0
        %454 = vmatpush1.msra.mxu0 0.0
        %455 = vmatprep.subr.mxu0 0.0
        %456 = vmatpush1.msra.mxu0 0.0
        %457 = vmatprep.subr.mxu0 0.0
        %458 = vmatpush1.msra.mxu0 0.0
        %459 = vmatprep.subr.mxu0 0.0
        %460 = vmatpush1.msra.mxu0 0.0
        %461 = vmatprep.subr.mxu0 0.0
        %462 = vmatpush1.msra.mxu0 0.0
        %463 = vmatprep.subr.mxu0 0.0
        %464 = vmatpush1.msra.mxu0 0.0
        %465 = vmatprep.subr.mxu0 0.0
        %466 = vmatpush1.msra.mxu0 0.0
        %467 = vmatprep.subr.mxu0 0.0
        %468 = vmatpush1.msra.mxu0 0.0
        %469 = vmatprep.subr.mxu0 0.0
        %470 = vmatpush1.msra.mxu0 0.0
        %471 = vmatprep.subr.mxu0 0.0
        %472 = vmatpush1.msra.mxu0 0.0
        %473 = vmatprep.subr.mxu0 0.0
        %474 = vmatpush1.msra.mxu0 0.0
        %475 = vmatprep.subr.mxu0 0.0
        %476 = vmatpush1.msra.mxu0 0.0
        %477 = vmatprep.subr.mxu0 0.0
        %478 = vmatpush1.msra.mxu0 0.0
        %479 = vmatprep.subr.mxu0 0.0
        %480 = vmatpush1.msra.mxu0 0.0
        %481 = vmatprep.subr.mxu0 0.0
        %482 = vmatpush1.msra.mxu0 0.0
        %483 = vmatprep.subr.mxu0 0.0
        %484 = vmatpush1.msra.mxu0 0.0
        %485 = vmatprep.subr.mxu0 0.0
        %486 = vmatpush1.msra.mxu0 0.0
        %487 = vmatprep.subr.mxu0 0.0
        %488 = vmatpush1.msra.mxu0 0.0
        %489 = vmatprep.subr.mxu0 0.0
        %490 = vmatpush1.msra.mxu0 0.0
        %491 = vmatprep.mubr.f32.mxu0 0.0
        %492 = vmatmul.mubr.f32.gmra.mrb[0].mxu0 %v354
        %v493 = vpop.f32.mrb[0].mxu0
        %v494 = vadd.f32 %v350, %v493
        %v495 = vpop.f32.mrb[0].mxu0
        %496 = vdwg.mxu0
        %v497 = vmin.f32 %v423, 20.0
        %v498 = vmin.f32 %v425, 20.0
        %v499 = vmin.f32 %v494, 20.0
        %v500 = vmul.f32 %v497, 1.442695
        %v501 = vpow.pop %v500
        %v502 = vmul.f32 %v498, 1.442695
        %v503 = vpow.pop %v502
        %v504 = vmul.f32 %v499, 1.442695
        %v505 = vpow.pop %v504
        %v506 = vadd.f32 %v501, 2.0
        %v507 = vadd.f32 %v503, 2.0
        %v508 = vadd.f32 %v505, 2.0
        %v509 = vmul.f32 %v501, %v506
        %v510 = vmul.f32 %v503, %v507
        %v511 = vmul.f32 %v505, %v508
        %v512 = vadd.f32 %v509, 2.0
        %v513 = vadd.f32 %v510, 2.0
        %v514 = vadd.f32 %v511, 2.0
        %v515 = vrcp.pop %v512
        %v516 = vrcp.pop %v513
        %v517 = vrcp.pop %v514
        %v518 = vmul.f32 %v512, %v515
        %v519 = vmul.f32 %v513, %v516
        %v520 = vmul.f32 %v514, %v517
        %v521 = vsub.f32 2.0, %v518
        %v522 = vsub.f32 2.0, %v519
        %v523 = vsub.f32 2.0, %v520
        %v524 = vmul.f32 %v515, %v521
        %v525 = vmul.f32 %v516, %v522
        %v526 = vmul.f32 %v517, %v523
        %v527 = vmul.f32 %v509, %v524
        %v528 = vmul.f32 %v510, %v525
        %v529 = vmul.f32 %v511, %v526
        %v530 = vmul.f32 %v423, %v527
        %v531 = vmul.f32 %v425, %v528
        %v532 = vmul.f32 %v494, %v529
        %536 = vrot.lane.b32.xlu0 %v530, 18
        %v537 = vpop.permute.xlu0 %536
        %538 = vrot.lane.b32.xlu0 %v531, 18
        %v539 = vpop.permute.xlu0 %538
        %540 = vrot.lane.b32.xlu0 %v532, 18
        %v541 = vpop.permute.xlu0 %540
        %vm542 = vcmask 146432
        %v543 = vsel %vm542, %v537, %v539
        %v544 = vsel %vm542, %v539, %v541
        %vm548 = vcmask 1047696
        %549 = vst.msk [vmem:[#allocation2] sm:$0xff] %vm548, %v537
        %550 = vst [vmem:[#allocation2 + $0x8] sm:$0xff] %v543
        %vm551 = vcmask 392192
        %552 = vst.msk [vmem:[#allocation2 + $0x10] sm:$0xff] %vm551, %v544
        %v553 = vld [vmem:[%s313] sm:$0xff]
        %555 = vrot.lane.b32.xlu0 %v553, 127
        %v556 = vpop.permute.xlu0 %555
        %558 = vrot.lane.b32.xlu0 %v553, 126
        %v559 = vpop.permute.xlu0 %558
        %v561 = vld [vmem:[%s3] sm:$0xff]
        %563 = vset.pattern.permute.xlu0 0
        %564 = vperm.xlu0 %563, %v561
        %v565 = vpop.permute.xlu0 %564
        %567 = vmatprep.subr.mxu0 0.0
        %568 = vmatpush1.msra.mxu0 %v553
        %569 = vmatprep.subr.mxu0 0.0
        %570 = vmatpush1.msra.mxu0 %v556
        %571 = vmatprep.subr.mxu0 0.0
        %572 = vmatpush1.msra.mxu0 %v559
        %573 = vmatprep.subr.mxu0 0.0
        %574 = vmatpush1.msra.mxu0 0.0
        %575 = vmatprep.subr.mxu0 0.0
        %576 = vmatpush1.msra.mxu0 0.0
        %577 = vmatprep.subr.mxu0 0.0
        %578 = vmatpush1.msra.mxu0 0.0
        %579 = vmatprep.subr.mxu0 0.0
        %580 = vmatpush1.msra.mxu0 0.0
        %581 = vmatprep.subr.mxu0 0.0
        %582 = vmatpush1.msra.mxu0 0.0
        %583 = vmatprep.subr.mxu0 0.0
        %584 = vmatpush1.msra.mxu0 0.0
        %585 = vmatprep.subr.mxu0 0.0
        %586 = vmatpush1.msra.mxu0 0.0
        %587 = vmatprep.subr.mxu0 0.0
        %588 = vmatpush1.msra.mxu0 0.0
        %589 = vmatprep.subr.mxu0 0.0
        %590 = vmatpush1.msra.mxu0 0.0
        %591 = vmatprep.subr.mxu0 0.0
        %592 = vmatpush1.msra.mxu0 0.0
        %593 = vmatprep.subr.mxu0 0.0
        %594 = vmatpush1.msra.mxu0 0.0
        %595 = vmatprep.subr.mxu0 0.0
        %596 = vmatpush1.msra.mxu0 0.0
        %597 = vmatprep.subr.mxu0 0.0
        %598 = vmatpush1.msra.mxu0 0.0
        %599 = vmatprep.subr.mxu0 0.0
        %600 = vmatpush1.msra.mxu0 0.0
        %601 = vmatprep.subr.mxu0 0.0
        %602 = vmatpush1.msra.mxu0 0.0
        %603 = vmatprep.subr.mxu0 0.0
        %604 = vmatpush1.msra.mxu0 0.0
        %605 = vmatprep.subr.mxu0 0.0
        %606 = vmatpush1.msra.mxu0 0.0
        %607 = vmatprep.subr.mxu0 0.0
        %608 = vmatpush1.msra.mxu0 0.0
        %609 = vmatprep.subr.mxu0 0.0
        %610 = vmatpush1.msra.mxu0 0.0
        %611 = vmatprep.subr.mxu0 0.0
        %612 = vmatpush1.msra.mxu0 0.0
        %613 = vmatprep.subr.mxu0 0.0
        %614 = vmatpush1.msra.mxu0 0.0
        %615 = vmatprep.subr.mxu0 0.0
        %616 = vmatpush1.msra.mxu0 0.0
        %617 = vmatprep.subr.mxu0 0.0
        %618 = vmatpush1.msra.mxu0 0.0
        %619 = vmatprep.subr.mxu0 0.0
        %620 = vmatpush1.msra.mxu0 0.0
        %621 = vmatprep.subr.mxu0 0.0
        %622 = vmatpush1.msra.mxu0 0.0
        %623 = vmatprep.subr.mxu0 0.0
        %624 = vmatpush1.msra.mxu0 0.0
        %625 = vmatprep.subr.mxu0 0.0
        %626 = vmatpush1.msra.mxu0 0.0
        %627 = vmatprep.subr.mxu0 0.0
        %628 = vmatpush1.msra.mxu0 0.0
        %629 = vmatprep.subr.mxu0 0.0
        %630 = vmatpush1.msra.mxu0 0.0
        %631 = vmatprep.mubr.f32.mxu0 0.0
        %632 = vmatmul.mubr.f32.gmra.mrb[0].mxu0 %v354
        %v633 = vpop.f32.mrb[0].mxu0
        %v634 = vadd.f32 %v565, %v633
        %v635 = vpop.f32.mrb[0].mxu0
        %636 = vdwg.mxu0
        %v637 = vmin.f32 %v634, 20.0
        %v638 = vmul.f32 %v637, 1.442695
        %v639 = vpow.pop %v638
        %v640 = vadd.f32 %v639, 2.0
        %v641 = vmul.f32 %v639, %v640
        %v642 = vadd.f32 %v641, 2.0
        %v643 = vrcp.pop %v642
        %v644 = vmul.f32 %v642, %v643
        %v645 = vsub.f32 2.0, %v644
        %v646 = vmul.f32 %v643, %v645
        %v647 = vmul.f32 %v641, %v646
        %v648 = vmul.f32 %v634, %v647
        %649 = vst.msk [vmem:[#allocation2] sm:$0xff] %vm542, %v648
        %651 = vrot.lane.b32.xlu0 %v648, 32
        %v652 = vpop.permute.xlu0 %651
        %vm654 = vcmask 540048
        %655 = vst.msk [vmem:[#allocation2 + $0x10] sm:$0xff] %vm654, %v652
        %p656 = scmp.eq.s32.totalorder %s28, 0
        // Predicated region
        $region49: #{tpu_custom_call.1} parent=43 // pred_check
          %p657 = pneg %p656
        $region50: #{tpu_custom_call.1} parent=43 // pred_check_branch
          %659 = sbr.rel (%p657) target = $region52
        $region51: #{tpu_custom_call.1} parent=43 // pred_region
          %660 = vst.msk [vmem:[#allocation2] sm:$0xff] %vm542, 0.0
          %vm661 = vcmask 556432
          %662 = vst.msk [vmem:[#allocation2 + $0x10] sm:$0xff] %vm661, 0.0
        $region52: #{tpu_custom_call.1} parent=43 // pred_fallthru
          _
        %v663 = vld [vmem:[#allocation2] sm:$0xff]
        %v664 = vld [vmem:[#allocation2 + $0x8] sm:$0xff]
        %v665 = vld [vmem:[#allocation2 + $0x10] sm:$0xff]
        %669 = vrot.lane.b32.xlu0 %v663, 110
        %v670 = vpop.permute.xlu0 %669
        %671 = vrot.lane.b32.xlu0 %v664, 110
        %v672 = vpop.permute.xlu0 %671
        %673 = vrot.lane.b32.xlu0 %v665, 110
        %v674 = vpop.permute.xlu0 %673
        %vm675 = vcmask 900096
        %v676 = vsel %vm675, %v670, %v672
        %v677 = vsel %vm675, %v672, %v674
        %681 = vrot.lane.b32.xlu0 %v663, 92
        %v682 = vpop.permute.xlu0 %681
        %683 = vrot.lane.b32.xlu0 %v664, 92
        %v684 = vpop.permute.xlu0 %683
        %685 = vrot.lane.b32.xlu0 %v665, 92
        %v686 = vpop.permute.xlu0 %685
        %vm687 = vcmask 752640
        %v688 = vsel %vm687, %v682, %v684
        %v689 = vsel %vm687, %v684, %v686
        %v693 = vld [vmem:[%s5] sm:$0xff]
        %695 = vset.pattern.permute.xlu0 0
        %696 = vperm.xlu0 %695, %v693
        %v697 = vpop.permute.xlu0 %696
        %v700 = vsel %vm352, %v315, 0
        %702 = vmatprep.subr.mxu0 %v664
        %703 = vmatpush1.msra.mxu0 %v663
        %704 = vmatprep.subr.mxu0 %v677
        %705 = vmatpush1.msra.mxu0 %v676
        %706 = vmatprep.subr.mxu0 %v689
        %707 = vmatpush1.msra.mxu0 %v688
        %708 = vmatprep.subr.mxu0 0.0
        %709 = vmatpush1.msra.mxu0 0.0
        %710 = vmatprep.subr.mxu0 0.0
        %711 = vmatpush1.msra.mxu0 0.0
        %712 = vmatprep.subr.mxu0 0.0
        %713 = vmatpush1.msra.mxu0 0.0
        %714 = vmatprep.subr.mxu0 0.0
        %715 = vmatpush1.msra.mxu0 0.0
        %716 = vmatprep.subr.mxu0 0.0
        %717 = vmatpush1.msra.mxu0 0.0
        %718 = vmatprep.subr.mxu0 0.0
        %719 = vmatpush1.msra.mxu0 0.0
        %720 = vmatprep.subr.mxu0 0.0
        %721 = vmatpush1.msra.mxu0 0.0
        %722 = vmatprep.subr.mxu0 0.0
        %723 = vmatpush1.msra.mxu0 0.0
        %724 = vmatprep.subr.mxu0 0.0
        %725 = vmatpush1.msra.mxu0 0.0
        %726 = vmatprep.subr.mxu0 0.0
        %727 = vmatpush1.msra.mxu0 0.0
        %728 = vmatprep.subr.mxu0 0.0
        %729 = vmatpush1.msra.mxu0 0.0
        %730 = vmatprep.subr.mxu0 0.0
        %731 = vmatpush1.msra.mxu0 0.0
        %732 = vmatprep.subr.mxu0 0.0
        %733 = vmatpush1.msra.mxu0 0.0
        %734 = vmatprep.subr.mxu0 0.0
        %735 = vmatpush1.msra.mxu0 0.0
        %736 = vmatprep.subr.mxu0 0.0
        %737 = vmatpush1.msra.mxu0 0.0
        %738 = vmatprep.subr.mxu0 0.0
        %739 = vmatpush1.msra.mxu0 0.0
        %740 = vmatprep.subr.mxu0 0.0
        %741 = vmatpush1.msra.mxu0 0.0
        %742 = vmatprep.subr.mxu0 0.0
        %743 = vmatpush1.msra.mxu0 0.0
        %744 = vmatprep.subr.mxu0 0.0
        %745 = vmatpush1.msra.mxu0 0.0
        %746 = vmatprep.subr.mxu0 0.0
        %747 = vmatpush1.msra.mxu0 0.0
        %748 = vmatprep.subr.mxu0 0.0
        %749 = vmatpush1.msra.mxu0 0.0
        %750 = vmatprep.subr.mxu0 0.0
        %751 = vmatpush1.msra.mxu0 0.0
        %752 = vmatprep.subr.mxu0 0.0
        %753 = vmatpush1.msra.mxu0 0.0
        %754 = vmatprep.subr.mxu0 0.0
        %755 = vmatpush1.msra.mxu0 0.0
        %756 = vmatprep.subr.mxu0 0.0
        %757 = vmatpush1.msra.mxu0 0.0
        %758 = vmatprep.subr.mxu0 0.0
        %759 = vmatpush1.msra.mxu0 0.0
        %760 = vmatprep.subr.mxu0 0.0
        %761 = vmatpush1.msra.mxu0 0.0
        %762 = vmatprep.subr.mxu0 0.0
        %763 = vmatpush1.msra.mxu0 0.0
        %764 = vmatprep.subr.mxu0 0.0
        %765 = vmatpush1.msra.mxu0 0.0
        %766 = vmatprep.mubr.f32.mxu0 0.0
        %767 = vmatmul.mubr.f32.gmra.mrb[0].mxu0 %v700
        %v768 = vpop.f32.mrb[0].mxu0
        %v769 = vadd.f32 %v697, %v768
        %v770 = vpop.f32.mrb[0].mxu0
        %v771 = vadd.f32 %v697, %v770
        %772 = vdwg.mxu0
        %773 = vmatprep.subr.mxu0 0.0
        %774 = vmatpush1.msra.mxu0 %v665
        %775 = vmatprep.subr.mxu0 0.0
        %776 = vmatpush1.msra.mxu0 %v674
        %777 = vmatprep.subr.mxu0 0.0
        %778 = vmatpush1.msra.mxu0 %v686
        %779 = vmatprep.subr.mxu0 0.0
        %780 = vmatpush1.msra.mxu0 0.0
        %781 = vmatprep.subr.mxu0 0.0
        %782 = vmatpush1.msra.mxu0 0.0
        %783 = vmatprep.subr.mxu0 0.0
        %784 = vmatpush1.msra.mxu0 0.0
        %785 = vmatprep.subr.mxu0 0.0
        %786 = vmatpush1.msra.mxu0 0.0
        %787 = vmatprep.subr.mxu0 0.0
        %788 = vmatpush1.msra.mxu0 0.0
        %789 = vmatprep.subr.mxu0 0.0
        %790 = vmatpush1.msra.mxu0 0.0
        %791 = vmatprep.subr.mxu0 0.0
        %792 = vmatpush1.msra.mxu0 0.0
        %793 = vmatprep.subr.mxu0 0.0
        %794 = vmatpush1.msra.mxu0 0.0
        %795 = vmatprep.subr.mxu0 0.0
        %796 = vmatpush1.msra.mxu0 0.0
        %797 = vmatprep.subr.mxu0 0.0
        %798 = vmatpush1.msra.mxu0 0.0
        %799 = vmatprep.subr.mxu0 0.0
        %800 = vmatpush1.msra.mxu0 0.0
        %801 = vmatprep.subr.mxu0 0.0
        %802 = vmatpush1.msra.mxu0 0.0
        %803 = vmatprep.subr.mxu0 0.0
        %804 = vmatpush1.msra.mxu0 0.0
        %805 = vmatprep.subr.mxu0 0.0
        %806 = vmatpush1.msra.mxu0 0.0
        %807 = vmatprep.subr.mxu0 0.0
        %808 = vmatpush1.msra.mxu0 0.0
        %809 = vmatprep.subr.mxu0 0.0
        %810 = vmatpush1.msra.mxu0 0.0
        %811 = vmatprep.subr.mxu0 0.0
        %812 = vmatpush1.msra.mxu0 0.0
        %813 = vmatprep.subr.mxu0 0.0
        %814 = vmatpush1.msra.mxu0 0.0
        %815 = vmatprep.subr.mxu0 0.0
        %816 = vmatpush1.msra.mxu0 0.0
        %817 = vmatprep.subr.mxu0 0.0
        %818 = vmatpush1.msra.mxu0 0.0
        %819 = vmatprep.subr.mxu0 0.0
        %820 = vmatpush1.msra.mxu0 0.0
        %821 = vmatprep.subr.mxu0 0.0
        %822 = vmatpush1.msra.mxu0 0.0
        %823 = vmatprep.subr.mxu0 0.0
        %824 = vmatpush1.msra.mxu0 0.0
        %825 = vmatprep.subr.mxu0 0.0
        %826 = vmatpush1.msra.mxu0 0.0
        %827 = vmatprep.subr.mxu0 0.0
        %828 = vmatpush1.msra.mxu0 0.0
        %829 = vmatprep.subr.mxu0 0.0
        %830 = vmatpush1.msra.mxu0 0.0
        %831 = vmatprep.subr.mxu0 0.0
        %832 = vmatpush1.msra.mxu0 0.0
        %833 = vmatprep.subr.mxu0 0.0
        %834 = vmatpush1.msra.mxu0 0.0
        %835 = vmatprep.subr.mxu0 0.0
        %836 = vmatpush1.msra.mxu0 0.0
        %837 = vmatprep.mubr.f32.mxu0 0.0
        %838 = vmatmul.mubr.f32.gmra.mrb[0].mxu0 %v700
        %v839 = vpop.f32.mrb[0].mxu0
        %v840 = vadd.f32 %v697, %v839
        %v841 = vpop.f32.mrb[0].mxu0
        %842 = vdwg.mxu0
        %v843 = vmin.f32 %v769, 20.0
        %v844 = vmin.f32 %v771, 20.0
        %v845 = vmin.f32 %v840, 20.0
        %v846 = vmul.f32 %v843, 1.442695
        %v847 = vpow.pop %v846
        %v848 = vmul.f32 %v844, 1.442695
        %v849 = vpow.pop %v848
        %v850 = vmul.f32 %v845, 1.442695
        %v851 = vpow.pop %v850
        %v852 = vadd.f32 %v847, 2.0
        %v853 = vadd.f32 %v849, 2.0
        %v854 = vadd.f32 %v851, 2.0
        %v855 = vmul.f32 %v847, %v852
        %v856 = vmul.f32 %v849, %v853
        %v857 = vmul.f32 %v851, %v854
        %v858 = vadd.f32 %v855, 2.0
        %v859 = vadd.f32 %v856, 2.0
        %v860 = vadd.f32 %v857, 2.0
        %v861 = vrcp.pop %v858
        %v862 = vrcp.pop %v859
        %v863 = vrcp.pop %v860
        %v864 = vmul.f32 %v858, %v861
        %v865 = vmul.f32 %v859, %v862
        %v866 = vmul.f32 %v860, %v863
        %v867 = vsub.f32 2.0, %v864
        %v868 = vsub.f32 2.0, %v865
        %v869 = vsub.f32 2.0, %v866
        %v870 = vmul.f32 %v861, %v867
        %v871 = vmul.f32 %v862, %v868
        %v872 = vmul.f32 %v863, %v869
        %v873 = vmul.f32 %v855, %v870
        %v874 = vmul.f32 %v856, %v871
        %v875 = vmul.f32 %v857, %v872
        %v876 = vmul.f32 %v769, %v873
        %v877 = vmul.f32 %v771, %v874
        %v878 = vmul.f32 %v840, %v875
        %879 = vst [vmem:[%s306] sm:$0xff] %v876
        %880 = vst [vmem:[%s306 + $0x8] sm:$0xff] %v877
        %vm881 = vcmask 261120
        %882 = vst.msk [vmem:[%s306 + $0x10] sm:$0xff] %vm881, %v878
        %s883 = sand.u32 %s185, 1
        %s884 = scalar_lea.sflag [#allocation5], %s883
        %s885 = sand.u32 %s185, 1
        %s886 = smul.addr %s885, 24
        %s887 = scalar_lea.vmem [#allocation6], %s886
        // Predicated region
        $region53: #{tpu_custom_call.1} parent=43 // pred_check
          %p888 = pneg %p195
        $region54: #{tpu_custom_call.1} parent=43 // pred_check_branch
          %890 = sbr.rel (%p888) target = $region56
        $region55: #{tpu_custom_call.1} parent=43 // pred_region
          %s892 = ssub.s32 384, 384
          %893 = vsyncadd %s884, %s892
          %s894 = smul.addr %s28, 3
          %s895 = smul.addr %s27, 3
          %s896 = sadd.s32 %s894, %s895
          %s897 = smul.addr %s896, 128
          %s898 = scalar_lea.hbm %s6, %s897
          %s900 = sshll.u32 %s887, 4
          %s901 = int_to_ptr.vmem [resolvable:$true] %s900
          %903 = dma.vmem_to_hbm [thread:$0]  %s901, 384, %s898, %s884
        $region56: #{tpu_custom_call.1} parent=43 // pred_fallthru
          _
      $region44: #{tpu_custom_call.1} parent=5 // pred_fallthru
        _
      %p904 = scmp.le.s32.totalorder 2, %s18
      // Predicated region
      $region57: #{tpu_custom_call.1} parent=5 // pred_check
        %p905 = pneg %p904
      $region58: #{tpu_custom_call.1} parent=5 // pred_check_branch
        %907 = sbr.rel (%p905) target = $region60
      $region59: #{tpu_custom_call.1} parent=5 // pred_region
        %s908 = ssub.s32 %s18, 2
        // Predicated region
        $region61: #{tpu_custom_call.1} parent=59 // pred_check
          %p909 = pneg %p201
        $region62: #{tpu_custom_call.1} parent=59 // pred_check_branch
          %911 = sbr.rel (%p909) target = $region64
        $region63: #{tpu_custom_call.1} parent=59 // pred_region
          %s912 = sand.u32 %s186, 1
          %s913 = scalar_lea.sflag [#allocation5], %s912
          %s914 = sand.u32 %s186, 1
          %s915 = smul.addr %s914, 24
          %s916 = scalar_lea.vmem [#allocation6], %s915
          %917 = dma.done %s913, 384
        $region64: #{tpu_custom_call.1} parent=59 // pred_fallthru
          _
      $region60: #{tpu_custom_call.1} parent=5 // pred_fallthru
        _
    $region6: #{tpu_custom_call.1} parent=1 // loop_footer
      %s22 = sadd.s32 1, %s18
    $region7: #{tpu_custom_call.1} parent=1 // loop_footer_branch
      %17 = sbr.rel target = $region3
    $region8: #{tpu_custom_call.1} parent=1 // loop_exit
      _
    %918 = vsyncpa [#allocation4], 1
    %s919 = scalar_lea.sflag [#allocation4], 1
    %920 = vsyncpa %s919, 1
    %921 = vsyncpa [#allocation5], 1
    %s922 = scalar_lea.sflag [#allocation5], 1
    %923 = vsyncpa %s922, 1

</llo_original>
